<compile_context>
chip_gen: v5e
topology: v5e:2x2
jax: 0.10.0
libtpu: 0.0.40
codegen_flags: <defaults>
</compile_context>

<pallas_src>
import math

import jax
import jax.numpy as jnp
from jax.experimental import pallas as pl
from jax.experimental.pallas import tpu as pltpu

# ---- module hyper-parameters (small, consistent with the PyTorch __init__) ----
WORD_DIM = 32                         # word_dim
ATTN_DIM = 8                          # attention_dim
ATTN_HEADS = 4                        # attention_heads
MULTI_DIM = ATTN_DIM * ATTN_HEADS     # = 32
HEAD_DIM = MULTI_DIM // ATTN_HEADS    # = 8
QUERY_DIM = 16                        # query_vector_dim
SEQ_LEN = 8
BATCH = 2
LN_EPS = 1e-5
QKV_PAD = 128                         # fused QKV weight padded to a full 128-lane slab


def _news_encoder_kernel(x_ref, wqkv_ref, bqkv_ref, gamma_ref, beta_ref,
                         wa_ref, ba_ref, qv_ref, out_ref):
    bt, seq, dw = x_ref.shape
    x = x_ref[...].reshape(bt * seq, dw)                  # [N, Dw], N = bt*seq

    # ---- fused QKV projection: one lane-dense [N, 128] MXU matmul ----
    qkv = jnp.dot(x, wqkv_ref[...],
                  preferred_element_type=jnp.float32) + bqkv_ref[...]
    qkv = qkv.reshape(bt, seq, QKV_PAD)

    # ---- gather heads onto the leading axis: group g = h * bt + b ----
    def head_slice(base, h):
        lo = base + h * HEAD_DIM
        return qkv[:, :, lo:lo + HEAD_DIM]                # [bt, S, dk]

    q_h = jnp.concatenate([head_slice(0, h) for h in range(ATTN_HEADS)], axis=0)
    k_h = jnp.concatenate([head_slice(MULTI_DIM, h) for h in range(ATTN_HEADS)], axis=0)
    v_h = jnp.concatenate([head_slice(2 * MULTI_DIM, h) for h in range(ATTN_HEADS)], axis=0)

    # ---- one batched scaled-dot-product attention over all (head, item) groups ----
    # (1/sqrt(dk) is already folded into Wq / bq at parameter-prep time.)
    s = jnp.einsum('gqd,gkd->gqk', q_h, k_h,
                   preferred_element_type=jnp.float32)    # [G, S, S], G = H*bt
    s = s - jnp.max(s, axis=-1, keepdims=True)
    p = jnp.exp(s)
    p = p / jnp.sum(p, axis=-1, keepdims=True)            # one softmax for all heads
    o_h = jnp.einsum('gqk,gkd->gqd', p, v_h,
                     preferred_element_type=jnp.float32)  # [G, S, dk]

    # ---- regroup heads back onto the feature axis -> [bt, S, MULTI_DIM] ----
    attn = jnp.concatenate(
        [o_h[h * bt:(h + 1) * bt] for h in range(ATTN_HEADS)], axis=-1)

    # ---- LayerNorm(multi_dim) ----
    mean = jnp.mean(attn, axis=-1, keepdims=True)
    var = jnp.mean((attn - mean) ** 2, axis=-1, keepdims=True)
    ln = (attn - mean) * jax.lax.rsqrt(var + LN_EPS)
    ln = ln * gamma_ref[...] + beta_ref[...]              # [bt, S, MULTI_DIM]
    # F.dropout in eval mode == identity.
    # TODO(synk): training-mode dropout (p=0.2) via pltpu.prng_* masking not implemented.

    # ---- Additive_Attention pooling over the sequence ----
    temp = jnp.tanh(
        jnp.dot(ln.reshape(bt * seq, MULTI_DIM), wa_ref[...],
                preferred_element_type=jnp.float32) + ba_ref[...])       # [N, Qd]
    # degenerate [N,Qd]@[Qd,1] matmul -> VPU multiply + lane reduce
    sc = jnp.sum(temp * qv_ref[...], axis=-1, keepdims=True)             # [N, 1]
    sc = sc.reshape(bt, seq, 1)
    sc = sc - jnp.max(sc, axis=1, keepdims=True)
    w = jnp.exp(sc)
    w = w / jnp.sum(w, axis=1, keepdims=True)                            # softmax over seq
    # degenerate [1,S]@[S,M] matmul -> VPU multiply + sublane reduce
    rep = jnp.sum(w * ln, axis=1)                                        # [bt, MULTI_DIM]
    out_ref[...] = rep


def news_encoder_forward(word_embedding, entity_embedding, category_index,
                         subcategory_index, params, batch_tile=None):
    # entity/category/subcategory inputs are unused by the reference forward.
    del entity_embedding, category_index, subcategory_index
    B, S, Dw = word_embedding.shape
    bt = B if batch_tile is None else min(batch_tile, B)
    assert B % bt == 0, "batch must be divisible by the batch tile"
    assert bt == B or bt % 8 == 0, "partial batch tiles must be sublane-aligned"
    grid = (B // bt,)

    full2d = lambda shape: pl.BlockSpec(shape, lambda i: (0, 0))

    in_specs = [
        pl.BlockSpec((bt, S, Dw), lambda i: (i, 0, 0)),          # word_embedding chunk
        full2d((Dw, QKV_PAD)), full2d((1, QKV_PAD)),             # fused Wqkv, bqkv
        full2d((1, MULTI_DIM)), full2d((1, MULTI_DIM)),          # LN gamma, beta
        full2d((MULTI_DIM, QUERY_DIM)), full2d((1, QUERY_DIM)),  # Wa, ba
        full2d((1, QUERY_DIM)),                                  # attention query (row)
    ]
    out_specs = pl.BlockSpec((bt, MULTI_DIM), lambda i: (i, 0))

    return pl.pallas_call(
        _news_encoder_kernel,
        out_shape=jax.ShapeDtypeStruct((B, MULTI_DIM), jnp.float32),
        grid=grid,
        in_specs=in_specs,
        out_specs=out_specs,
        compiler_params=pltpu.CompilerParams(
            dimension_semantics=("parallel",)),
    )(word_embedding,
      params["wqkv"], params["bqkv"], params["gamma"], params["beta"],
      params["wa"], params["ba"], params["qv_row"])


def init_params(key):
    """Raw parameters matching the PyTorch module layout."""
    ks = jax.random.split(key, 8)

    def u(k, shape, s=0.1):
        return jax.random.uniform(k, shape, jnp.float32, -s, s)

    return dict(
        wq=u(ks[0], (WORD_DIM, MULTI_DIM)),
        bq=u(ks[1], (1, MULTI_DIM), 0.01),
        wk=u(ks[2], (WORD_DIM, MULTI_DIM)),
        bk=u(ks[3], (1, MULTI_DIM), 0.01),
        wv=u(ks[4], (WORD_DIM, MULTI_DIM)),
        bv=u(ks[5], (1, MULTI_DIM), 0.01),
        gamma=jnp.ones((1, MULTI_DIM), jnp.float32),   # nn.LayerNorm default init
        beta=jnp.zeros((1, MULTI_DIM), jnp.float32),
        wa=u(ks[6], (MULTI_DIM, QUERY_DIM)),
        ba=jnp.zeros((1, QUERY_DIM), jnp.float32),
        qv=u(ks[7], (QUERY_DIM, 1)),
    )


def pack_params(raw):
    """One-time parameter prep: fuse Q/K/V into a single 128-lane-padded weight and
    fold the 1/sqrt(dk) attention scale into Wq / bq (no per-call or per-head scale)."""
    scale = 1.0 / math.sqrt(HEAD_DIM)
    wqkv = jnp.zeros((WORD_DIM, QKV_PAD), jnp.float32)
    wqkv = wqkv.at[:, 0:MULTI_DIM].set(raw["wq"] * scale)
    wqkv = wqkv.at[:, MULTI_DIM:2 * MULTI_DIM].set(raw["wk"])
    wqkv = wqkv.at[:, 2 * MULTI_DIM:3 * MULTI_DIM].set(raw["wv"])
    bqkv = jnp.zeros((1, QKV_PAD), jnp.float32)
    bqkv = bqkv.at[:, 0:MULTI_DIM].set(raw["bq"] * scale)
    bqkv = bqkv.at[:, MULTI_DIM:2 * MULTI_DIM].set(raw["bk"])
    bqkv = bqkv.at[:, 2 * MULTI_DIM:3 * MULTI_DIM].set(raw["bv"])
    return dict(
        wqkv=wqkv, bqkv=bqkv,
        gamma=raw["gamma"], beta=raw["beta"],
        wa=raw["wa"], ba=raw["ba"],
        qv_row=raw["qv"].reshape(1, QUERY_DIM),
    )


def _reference_forward(word_embedding, raw):
    """Pure-JAX mirror of the PyTorch module (eval mode) for correctness checking."""
    scale = 1.0 / math.sqrt(HEAD_DIM)
    q = word_embedding @ raw["wq"] + raw["bq"]
    k = word_embedding @ raw["wk"] + raw["bk"]
    v = word_embedding @ raw["wv"] + raw["bv"]
    heads = []
    for h in range(ATTN_HEADS):
        sl = slice(h * HEAD_DIM, (h + 1) * HEAD_DIM)
        s = jnp.einsum('bqd,bkd->bqk', q[..., sl], k[..., sl]) * scale
        p = jax.nn.softmax(s, axis=-1)
        heads.append(jnp.einsum('bqk,bkd->bqd', p, v[..., sl]))
    attn = jnp.concatenate(heads, axis=-1)
    mean = attn.mean(-1, keepdims=True)
    var = ((attn - mean) ** 2).mean(-1, keepdims=True)
    ln = (attn - mean) / jnp.sqrt(var + LN_EPS) * raw["gamma"] + raw["beta"]
    temp = jnp.tanh(ln @ raw["wa"] + raw["ba"])
    sc = jnp.squeeze(temp @ raw["qv"], -1)                 # [B, S]
    w = jax.nn.softmax(sc, axis=-1)[..., None]
    return jnp.sum(w * ln, axis=1)                         # [B, MULTI_DIM]


if __name__ == "__main__":
    key = jax.random.PRNGKey(0)
    kx, ke, kp = jax.random.split(key, 3)

    word_embedding = jax.random.normal(kx, (BATCH, SEQ_LEN, WORD_DIM), jnp.float32)
    entity_embedding = jax.random.normal(ke, (BATCH, SEQ_LEN, 16), jnp.float32)  # unused
    category_index = jnp.zeros((BATCH,), jnp.int32)       # unused
    subcategory_index = jnp.zeros((BATCH,), jnp.int32)    # unused

    raw = init_params(kp)
    params = pack_params(raw)        # one-time prep: QKV fusion + 1/sqrt(dk) fold

    news_rep = news_encoder_forward(word_embedding, entity_embedding,
                                    category_index, subcategory_index, params)
    news_rep = jax.block_until_ready(news_rep)
    assert news_rep.shape == (BATCH, MULTI_DIM)
    assert bool(jnp.all(jnp.isfinite(news_rep)))

    ref = _reference_forward(word_embedding, raw)
    assert bool(jnp.allclose(news_rep, ref, atol=2e-4, rtol=2e-4))
    print("KERNEL_OK")
</pallas_src>

<mosaic_0001>
module attributes {stable_mosaic.version = 11 : i64} {
  func.func @_news_encoder_kernel(%arg0: i32, %arg1: memref<2x8x32xf32, #tpu.memory_space<vmem>>, %arg2: memref<32x128xf32, #tpu.memory_space<vmem>>, %arg3: memref<1x128xf32, #tpu.memory_space<vmem>>, %arg4: memref<1x32xf32, #tpu.memory_space<vmem>>, %arg5: memref<1x32xf32, #tpu.memory_space<vmem>>, %arg6: memref<32x16xf32, #tpu.memory_space<vmem>>, %arg7: memref<1x16xf32, #tpu.memory_space<vmem>>, %arg8: memref<1x16xf32, #tpu.memory_space<vmem>>, %arg9: memref<2x32xf32, #tpu.memory_space<vmem>>) attributes {dimension_semantics = [#tpu.dimension_semantics<parallel>], iteration_bounds = array<i64: 1>, scalar_prefetch = 0 : i64, scratch_operands = 0 : i64, tpu.core_type = #tpu.core_type<tc>, window_params = [{transform_indices = @transform_0, window_bounds = array<i64: 2, 8, 32>}, {pipeline_mode = #tpu.pipeline_mode<synchronous>, transform_indices = @transform_1, window_bounds = array<i64: 32, 128>}, {pipeline_mode = #tpu.pipeline_mode<synchronous>, transform_indices = @transform_2, window_bounds = array<i64: 1, 128>}, {pipeline_mode = #tpu.pipeline_mode<synchronous>, transform_indices = @transform_3, window_bounds = array<i64: 1, 32>}, {pipeline_mode = #tpu.pipeline_mode<synchronous>, transform_indices = @transform_4, window_bounds = array<i64: 1, 32>}, {pipeline_mode = #tpu.pipeline_mode<synchronous>, transform_indices = @transform_5, window_bounds = array<i64: 32, 16>}, {pipeline_mode = #tpu.pipeline_mode<synchronous>, transform_indices = @transform_6, window_bounds = array<i64: 1, 16>}, {pipeline_mode = #tpu.pipeline_mode<synchronous>, transform_indices = @transform_7, window_bounds = array<i64: 1, 16>}, {transform_indices = @transform_8, window_bounds = array<i64: 2, 32>}]} {
    %c0 = arith.constant 0 : index
    %c0_0 = arith.constant 0 : index
    %c0_1 = arith.constant 0 : index
    %0 = vector.load %arg1[%c0, %c0_0, %c0_1] : memref<2x8x32xf32, #tpu.memory_space<vmem>>, vector<2x8x32xf32>
    %1 = vector.shape_cast %0 : vector<2x8x32xf32> to vector<16x32xf32>
    %c0_2 = arith.constant 0 : index
    %c0_3 = arith.constant 0 : index
    %2 = vector.load %arg2[%c0_2, %c0_3] : memref<32x128xf32, #tpu.memory_space<vmem>>, vector<32x128xf32>
    %cst = arith.constant dense<0.000000e+00> : vector<16x128xf32>
    %3 = tpu.matmul %1, %2, %cst {dimension_numbers = #tpu.dot_dimension_numbers<[1], [0], [0], [1], [0, 0, 1, 1], [], []>} : vector<16x32xf32>, vector<32x128xf32>, vector<16x128xf32> -> vector<16x128xf32>
    %c0_4 = arith.constant 0 : index
    %c0_5 = arith.constant 0 : index
    %4 = vector.load %arg3[%c0_4, %c0_5] : memref<1x128xf32, #tpu.memory_space<vmem>>, vector<1x128xf32>
    %5 = vector.broadcast %4 : vector<1x128xf32> to vector<16x128xf32>
    %6 = arith.addf %3, %5 : vector<16x128xf32>
    %7 = vector.shape_cast %6 : vector<16x128xf32> to vector<2x8x128xf32>
    %8 = vector.extract_strided_slice %7 {offsets = [0, 0, 0], sizes = [2, 8, 8], strides = [1, 1, 1]} : vector<2x8x128xf32> to vector<2x8x8xf32>
    %9 = vector.extract_strided_slice %7 {offsets = [0, 0, 8], sizes = [2, 8, 8], strides = [1, 1, 1]} : vector<2x8x128xf32> to vector<2x8x8xf32>
    %10 = vector.extract_strided_slice %7 {offsets = [0, 0, 16], sizes = [2, 8, 8], strides = [1, 1, 1]} : vector<2x8x128xf32> to vector<2x8x8xf32>
    %11 = vector.extract_strided_slice %7 {offsets = [0, 0, 24], sizes = [2, 8, 8], strides = [1, 1, 1]} : vector<2x8x128xf32> to vector<2x8x8xf32>
    %12 = tpu.concatenate %8, %9, %10, %11 in 0 : vector<2x8x8xf32>, vector<2x8x8xf32>, vector<2x8x8xf32>, vector<2x8x8xf32> -> vector<8x8x8xf32>
    %13 = vector.extract_strided_slice %7 {offsets = [0, 0, 32], sizes = [2, 8, 8], strides = [1, 1, 1]} : vector<2x8x128xf32> to vector<2x8x8xf32>
    %14 = vector.extract_strided_slice %7 {offsets = [0, 0, 40], sizes = [2, 8, 8], strides = [1, 1, 1]} : vector<2x8x128xf32> to vector<2x8x8xf32>
    %15 = vector.extract_strided_slice %7 {offsets = [0, 0, 48], sizes = [2, 8, 8], strides = [1, 1, 1]} : vector<2x8x128xf32> to vector<2x8x8xf32>
    %16 = vector.extract_strided_slice %7 {offsets = [0, 0, 56], sizes = [2, 8, 8], strides = [1, 1, 1]} : vector<2x8x128xf32> to vector<2x8x8xf32>
    %17 = tpu.concatenate %13, %14, %15, %16 in 0 : vector<2x8x8xf32>, vector<2x8x8xf32>, vector<2x8x8xf32>, vector<2x8x8xf32> -> vector<8x8x8xf32>
    %18 = vector.extract_strided_slice %7 {offsets = [0, 0, 64], sizes = [2, 8, 8], strides = [1, 1, 1]} : vector<2x8x128xf32> to vector<2x8x8xf32>
    %19 = vector.extract_strided_slice %7 {offsets = [0, 0, 72], sizes = [2, 8, 8], strides = [1, 1, 1]} : vector<2x8x128xf32> to vector<2x8x8xf32>
    %20 = vector.extract_strided_slice %7 {offsets = [0, 0, 80], sizes = [2, 8, 8], strides = [1, 1, 1]} : vector<2x8x128xf32> to vector<2x8x8xf32>
    %21 = vector.extract_strided_slice %7 {offsets = [0, 0, 88], sizes = [2, 8, 8], strides = [1, 1, 1]} : vector<2x8x128xf32> to vector<2x8x8xf32>
    %22 = tpu.concatenate %18, %19, %20, %21 in 0 : vector<2x8x8xf32>, vector<2x8x8xf32>, vector<2x8x8xf32>, vector<2x8x8xf32> -> vector<8x8x8xf32>
    "tpu.trace_start"() <{level = 10 : i32, message = "gqd,gkd->gqk"}> : () -> ()
    %cst_6 = arith.constant dense<0.000000e+00> : vector<8x8x8xf32>
    %23 = tpu.matmul %12, %17, %cst_6 {dimension_numbers = #tpu.dot_dimension_numbers<[2], [2], [1], [1], [0, 0, 0, 1, 1, 1], [0], [0]>} : vector<8x8x8xf32>, vector<8x8x8xf32>, vector<8x8x8xf32> -> vector<8x8x8xf32>
    "tpu.trace_stop"() : () -> ()
    %cst_7 = arith.constant dense<0xFF800000> : vector<8x8xf32>
    %24 = vector.multi_reduction <maximumf>, %23, %cst_7 [2] : vector<8x8x8xf32> to vector<8x8xf32>
    %25 = vector.shape_cast %24 : vector<8x8xf32> to vector<8x8x1xf32>
    %26 = vector.broadcast %25 : vector<8x8x1xf32> to vector<8x8x8xf32>
    %27 = arith.subf %23, %26 : vector<8x8x8xf32>
    %28 = math.exp %27 : vector<8x8x8xf32>
    %cst_8 = arith.constant dense<0.000000e+00> : vector<8x8xf32>
    %29 = vector.multi_reduction <add>, %28, %cst_8 [2] : vector<8x8x8xf32> to vector<8x8xf32>
    %30 = vector.shape_cast %29 : vector<8x8xf32> to vector<8x8x1xf32>
    %31 = vector.broadcast %30 : vector<8x8x1xf32> to vector<8x8x8xf32>
    %32 = arith.divf %28, %31 : vector<8x8x8xf32>
    "tpu.trace_start"() <{level = 10 : i32, message = "gqk,gkd->gqd"}> : () -> ()
    %cst_9 = arith.constant dense<0.000000e+00> : vector<8x8x8xf32>
    %33 = tpu.matmul %32, %22, %cst_9 {dimension_numbers = #tpu.dot_dimension_numbers<[2], [1], [1], [2], [0, 0, 0, 1, 1, 2], [0], [0]>} : vector<8x8x8xf32>, vector<8x8x8xf32>, vector<8x8x8xf32> -> vector<8x8x8xf32>
    "tpu.trace_stop"() : () -> ()
    %34 = vector.extract_strided_slice %33 {offsets = [0, 0, 0], sizes = [2, 8, 8], strides = [1, 1, 1]} : vector<8x8x8xf32> to vector<2x8x8xf32>
    %35 = vector.extract_strided_slice %33 {offsets = [2, 0, 0], sizes = [2, 8, 8], strides = [1, 1, 1]} : vector<8x8x8xf32> to vector<2x8x8xf32>
    %36 = vector.extract_strided_slice %33 {offsets = [4, 0, 0], sizes = [2, 8, 8], strides = [1, 1, 1]} : vector<8x8x8xf32> to vector<2x8x8xf32>
    %37 = vector.extract_strided_slice %33 {offsets = [6, 0, 0], sizes = [2, 8, 8], strides = [1, 1, 1]} : vector<8x8x8xf32> to vector<2x8x8xf32>
    %38 = tpu.concatenate %34, %35, %36, %37 in 2 : vector<2x8x8xf32>, vector<2x8x8xf32>, vector<2x8x8xf32>, vector<2x8x8xf32> -> vector<2x8x32xf32>
    %cst_10 = arith.constant dense<0.000000e+00> : vector<2x8xf32>
    %39 = vector.multi_reduction <add>, %38, %cst_10 [2] : vector<2x8x32xf32> to vector<2x8xf32>
    %40 = vector.shape_cast %39 : vector<2x8xf32> to vector<2x8x1xf32>
    %cst_11 = arith.constant 3.200000e+01 : f32
    %41 = vector.broadcast %cst_11 : f32 to vector<2x8x1xf32>
    %42 = arith.divf %40, %41 : vector<2x8x1xf32>
    %43 = vector.broadcast %42 : vector<2x8x1xf32> to vector<2x8x32xf32>
    %44 = arith.subf %38, %43 : vector<2x8x32xf32>
    %45 = arith.mulf %44, %44 : vector<2x8x32xf32>
    %cst_12 = arith.constant dense<0.000000e+00> : vector<2x8xf32>
    %46 = vector.multi_reduction <add>, %45, %cst_12 [2] : vector<2x8x32xf32> to vector<2x8xf32>
    %47 = vector.shape_cast %46 : vector<2x8xf32> to vector<2x8x1xf32>
    %cst_13 = arith.constant 3.200000e+01 : f32
    %48 = vector.broadcast %cst_13 : f32 to vector<2x8x1xf32>
    %49 = arith.divf %47, %48 : vector<2x8x1xf32>
    %50 = vector.broadcast %42 : vector<2x8x1xf32> to vector<2x8x32xf32>
    %51 = arith.subf %38, %50 : vector<2x8x32xf32>
    %cst_14 = arith.constant 9.99999974E-6 : f32
    %52 = vector.broadcast %cst_14 : f32 to vector<2x8x1xf32>
    %53 = arith.addf %49, %52 : vector<2x8x1xf32>
    %54 = math.rsqrt %53 : vector<2x8x1xf32>
    %55 = vector.broadcast %54 : vector<2x8x1xf32> to vector<2x8x32xf32>
    %56 = arith.mulf %51, %55 : vector<2x8x32xf32>
    %c0_15 = arith.constant 0 : index
    %c0_16 = arith.constant 0 : index
    %57 = vector.load %arg4[%c0_15, %c0_16] : memref<1x32xf32, #tpu.memory_space<vmem>>, vector<1x32xf32>
    %58 = vector.shape_cast %57 : vector<1x32xf32> to vector<1x1x32xf32>
    %59 = vector.broadcast %58 : vector<1x1x32xf32> to vector<2x8x32xf32>
    %60 = arith.mulf %56, %59 : vector<2x8x32xf32>
    %c0_17 = arith.constant 0 : index
    %c0_18 = arith.constant 0 : index
    %61 = vector.load %arg5[%c0_17, %c0_18] : memref<1x32xf32, #tpu.memory_space<vmem>>, vector<1x32xf32>
    %62 = vector.shape_cast %61 : vector<1x32xf32> to vector<1x1x32xf32>
    %63 = vector.broadcast %62 : vector<1x1x32xf32> to vector<2x8x32xf32>
    %64 = arith.addf %60, %63 : vector<2x8x32xf32>
    %65 = vector.shape_cast %64 : vector<2x8x32xf32> to vector<16x32xf32>
    %c0_19 = arith.constant 0 : index
    %c0_20 = arith.constant 0 : index
    %66 = vector.load %arg6[%c0_19, %c0_20] : memref<32x16xf32, #tpu.memory_space<vmem>>, vector<32x16xf32>
    %cst_21 = arith.constant dense<0.000000e+00> : vector<16x16xf32>
    %67 = tpu.matmul %65, %66, %cst_21 {dimension_numbers = #tpu.dot_dimension_numbers<[1], [0], [0], [1], [0, 0, 1, 1], [], []>} : vector<16x32xf32>, vector<32x16xf32>, vector<16x16xf32> -> vector<16x16xf32>
    %c0_22 = arith.constant 0 : index
    %c0_23 = arith.constant 0 : index
    %68 = vector.load %arg7[%c0_22, %c0_23] : memref<1x16xf32, #tpu.memory_space<vmem>>, vector<1x16xf32>
    %69 = vector.broadcast %68 : vector<1x16xf32> to vector<16x16xf32>
    %70 = arith.addf %67, %69 : vector<16x16xf32>
    %71 = math.tanh %70 : vector<16x16xf32>
    %c0_24 = arith.constant 0 : index
    %c0_25 = arith.constant 0 : index
    %72 = vector.load %arg8[%c0_24, %c0_25] : memref<1x16xf32, #tpu.memory_space<vmem>>, vector<1x16xf32>
    %73 = vector.broadcast %72 : vector<1x16xf32> to vector<16x16xf32>
    %74 = arith.mulf %71, %73 : vector<16x16xf32>
    %cst_26 = arith.constant dense<0.000000e+00> : vector<16xf32>
    %75 = vector.multi_reduction <add>, %74, %cst_26 [1] : vector<16x16xf32> to vector<16xf32>
    %76 = vector.shape_cast %75 : vector<16xf32> to vector<16x1xf32>
    %77 = vector.shape_cast %76 : vector<16x1xf32> to vector<2x8x1xf32>
    %cst_27 = arith.constant dense<0xFF800000> : vector<2x1xf32>
    %78 = vector.multi_reduction <maximumf>, %77, %cst_27 [1] : vector<2x8x1xf32> to vector<2x1xf32>
    %79 = vector.shape_cast %78 : vector<2x1xf32> to vector<2x1x1xf32>
    %80 = vector.broadcast %79 : vector<2x1x1xf32> to vector<2x8x1xf32>
    %81 = arith.subf %77, %80 : vector<2x8x1xf32>
    %82 = math.exp %81 : vector<2x8x1xf32>
    %cst_28 = arith.constant dense<0.000000e+00> : vector<2x1xf32>
    %83 = vector.multi_reduction <add>, %82, %cst_28 [1] : vector<2x8x1xf32> to vector<2x1xf32>
    %84 = vector.shape_cast %83 : vector<2x1xf32> to vector<2x1x1xf32>
    %85 = vector.broadcast %84 : vector<2x1x1xf32> to vector<2x8x1xf32>
    %86 = arith.divf %82, %85 : vector<2x8x1xf32>
    %87 = vector.broadcast %86 : vector<2x8x1xf32> to vector<2x8x32xf32>
    %88 = arith.mulf %87, %64 : vector<2x8x32xf32>
    %cst_29 = arith.constant dense<0.000000e+00> : vector<2x32xf32>
    %89 = vector.multi_reduction <add>, %88, %cst_29 [1] : vector<2x8x32xf32> to vector<2x32xf32>
    %c0_30 = arith.constant 0 : index
    %c0_31 = arith.constant 0 : index
    %90 = vector.load %arg9[%c0_30, %c0_31] : memref<2x32xf32, #tpu.memory_space<vmem>>, vector<2x32xf32>
    tpu.vector_store %arg9[%c0_30, %c0_31], %89 {strides = array<i32>} : memref<2x32xf32, #tpu.memory_space<vmem>>, vector<2x32xf32>,
    return
  }
  func.func @transform_0(%arg0: i32) -> (i32, i32, i32) {
    %c0_i32 = arith.constant 0 : i32
    %c0_i32_0 = arith.constant 0 : i32
    %c0_i32_1 = arith.constant 0 : i32
    return %arg0, %c0_i32, %c0_i32_0 : i32, i32, i32
  }
  func.func @transform_1(%arg0: i32) -> (i32, i32) {
    %c0_i32 = arith.constant 0 : i32
    %c0_i32_0 = arith.constant 0 : i32
    %c0_i32_1 = arith.constant 0 : i32
    return %c0_i32, %c0_i32_0 : i32, i32
  }
  func.func @transform_2(%arg0: i32) -> (i32, i32) {
    %c0_i32 = arith.constant 0 : i32
    %c0_i32_0 = arith.constant 0 : i32
    %c0_i32_1 = arith.constant 0 : i32
    return %c0_i32, %c0_i32_0 : i32, i32
  }
  func.func @transform_3(%arg0: i32) -> (i32, i32) {
    %c0_i32 = arith.constant 0 : i32
    %c0_i32_0 = arith.constant 0 : i32
    %c0_i32_1 = arith.constant 0 : i32
    return %c0_i32, %c0_i32_0 : i32, i32
  }
  func.func @transform_4(%arg0: i32) -> (i32, i32) {
    %c0_i32 = arith.constant 0 : i32
    %c0_i32_0 = arith.constant 0 : i32
    %c0_i32_1 = arith.constant 0 : i32
    return %c0_i32, %c0_i32_0 : i32, i32
  }
  func.func @transform_5(%arg0: i32) -> (i32, i32) {
    %c0_i32 = arith.constant 0 : i32
    %c0_i32_0 = arith.constant 0 : i32
    %c0_i32_1 = arith.constant 0 : i32
    return %c0_i32, %c0_i32_0 : i32, i32
  }
  func.func @transform_6(%arg0: i32) -> (i32, i32) {
    %c0_i32 = arith.constant 0 : i32
    %c0_i32_0 = arith.constant 0 : i32
    %c0_i32_1 = arith.constant 0 : i32
    return %c0_i32, %c0_i32_0 : i32, i32
  }
  func.func @transform_7(%arg0: i32) -> (i32, i32) {
    %c0_i32 = arith.constant 0 : i32
    %c0_i32_0 = arith.constant 0 : i32
    %c0_i32_1 = arith.constant 0 : i32
    return %c0_i32, %c0_i32_0 : i32, i32
  }
  func.func @transform_8(%arg0: i32) -> (i32, i32) {
    %c0_i32 = arith.constant 0 : i32
    %c0_i32_0 = arith.constant 0 : i32
    return %arg0, %c0_i32 : i32, i32
  }
}

</mosaic_0001>

<llo_original>
// kernel: tpu_custom_call.1
$region0: #{tpu_custom_call.1}
  #allocation0 [shape = 'u32[]', space=smem, size = 0x4, offset = 0x4, fixed_abs, tag = 'smem constant byte address 0x4 - core index']
  #allocation1 [shape = 'u32[72,128]{1,0:T(1,128)}', space=vmem, size = 0x9000, scoped, tag = 'internal scratch']
  %s0 = inlined_call_operand.vmem [shape: f32[2,8,32], index: 0, kind: input, shape index: {}]
  %s1 = inlined_call_operand.vmem [shape: f32[32,128], index: 1, kind: input, shape index: {}]
  %s2 = inlined_call_operand.vmem [shape: f32[1,128], index: 2, kind: input, shape index: {}]
  %s3 = inlined_call_operand.vmem [shape: f32[1,32], index: 3, kind: input, shape index: {}]
  %s4 = inlined_call_operand.vmem [shape: f32[1,32], index: 4, kind: input, shape index: {}]
  %s5 = inlined_call_operand.vmem [shape: f32[32,16], index: 5, kind: input, shape index: {}]
  %s6 = inlined_call_operand.vmem [shape: f32[1,16], index: 6, kind: input, shape index: {}]
  %s7 = inlined_call_operand.vmem [shape: f32[1,16], index: 7, kind: input, shape index: {}]
  %s8 = inlined_call_operand.hbm [shape: f32[2,32], index: 8, kind: output, shape index: {}]
  %s9 = sld [smem:[#allocation0]]
  $region42: #{tpu_custom_call.1} parent=0
    _
  %s11 = ssub.s32 1, %s9
  %s12 = scalar_select 0, %s11, %s9
  $region1: #{tpu_custom_call.1} parent=0
    #allocation2 [shape = 'u8[1024]{0}', space=vmem, size = 0x400, scoped, tag = 'output window, operand 0, single buffered']
    #allocation3 [shape = 's32[1]{0}', space=sflag, size = 0x4, scoped, tag = 'scoped memory for tpu_custom_call.1']
    %13 = vsyncpa [#allocation3], 0
    // Predicated region
    $region2: #{tpu_custom_call.1} parent=1 // pred_check
      _
    $region3: #{tpu_custom_call.1} parent=1 // pred_check_branch
      %15 = sbr.rel (0) target = $region5
    $region4: #{tpu_custom_call.1} parent=1 // pred_region
      _
    $region5: #{tpu_custom_call.1} parent=1 // pred_fallthru
      _
    // Predicated region
    $region6: #{tpu_custom_call.1} parent=1 // pred_check
      _
    $region7: #{tpu_custom_call.1} parent=1 // pred_check_branch
      %17 = sbr.rel (0) target = $region9
    $region8: #{tpu_custom_call.1} parent=1 // pred_region
      _
    $region9: #{tpu_custom_call.1} parent=1 // pred_fallthru
      _
    // Predicated region
    $region10: #{tpu_custom_call.1} parent=1 // pred_check
      _
    $region11: #{tpu_custom_call.1} parent=1 // pred_check_branch
      %19 = sbr.rel (0) target = $region13
    $region12: #{tpu_custom_call.1} parent=1 // pred_region
      _
    $region13: #{tpu_custom_call.1} parent=1 // pred_fallthru
      _
    // Predicated region
    $region14: #{tpu_custom_call.1} parent=1 // pred_check
      _
    $region15: #{tpu_custom_call.1} parent=1 // pred_check_branch
      %21 = sbr.rel (0) target = $region17
    $region16: #{tpu_custom_call.1} parent=1 // pred_region
      _
    $region17: #{tpu_custom_call.1} parent=1 // pred_fallthru
      _
    // Predicated region
    $region18: #{tpu_custom_call.1} parent=1 // pred_check
      _
    $region19: #{tpu_custom_call.1} parent=1 // pred_check_branch
      %23 = sbr.rel (0) target = $region21
    $region20: #{tpu_custom_call.1} parent=1 // pred_region
      _
    $region21: #{tpu_custom_call.1} parent=1 // pred_fallthru
      _
    // Predicated region
    $region22: #{tpu_custom_call.1} parent=1 // pred_check
      _
    $region23: #{tpu_custom_call.1} parent=1 // pred_check_branch
      %25 = sbr.rel (0) target = $region25
    $region24: #{tpu_custom_call.1} parent=1 // pred_region
      _
    $region25: #{tpu_custom_call.1} parent=1 // pred_fallthru
      _
    // Predicated region
    $region26: #{tpu_custom_call.1} parent=1 // pred_check
      _
    $region27: #{tpu_custom_call.1} parent=1 // pred_check_branch
      %27 = sbr.rel (0) target = $region29
    $region28: #{tpu_custom_call.1} parent=1 // pred_region
      _
    $region29: #{tpu_custom_call.1} parent=1 // pred_fallthru
      _
    // Predicated region
    $region30: #{tpu_custom_call.1} parent=1 // pred_check
      _
    $region31: #{tpu_custom_call.1} parent=1 // pred_check_branch
      %29 = sbr.rel (0) target = $region33
    $region32: #{tpu_custom_call.1} parent=1 // pred_region
      _
    $region33: #{tpu_custom_call.1} parent=1 // pred_fallthru
      _
    %v30 = vld [vmem:[%s0] sm:$0xff]
    %v31 = vld [vmem:[%s0 + $0x8] sm:$0xff]
    %v32 = vld [vmem:[%s1] sm:$0xff]
    %v33 = vld [vmem:[%s1 + $0x8] sm:$0xff]
    %v34 = vld [vmem:[%s1 + $0x10] sm:$0xff]
    %v35 = vld [vmem:[%s1 + $0x18] sm:$0xff]
    %v36 = vld [vmem:[%s2] sm:$0x1]
    %v38 = vperm.slane %v36, 0
    %vm40 = vcmask 261120
    %v42 = vsel %vm40, %v30, 0
    %v45 = vsel %vm40, %v31, 0
    %47 = vmatpush.msra.mxu0 0.0
    %48 = vmatpush.msra.mxu0 0.0
    %49 = vmatpush.msra.mxu0 0.0
    %50 = vmatpush.msra.mxu0 0.0
    %51 = vmatpush.msra.mxu0 0.0
    %52 = vmatpush.msra.mxu0 0.0
    %53 = vmatpush.msra.mxu0 0.0
    %54 = vmatpush.msra.mxu0 0.0
    %55 = vmatpush.msra.mxu0 0.0
    %56 = vmatpush.msra.mxu0 0.0
    %57 = vmatpush.msra.mxu0 0.0
    %58 = vmatpush.msra.mxu0 0.0
    %59 = vmatpush.msra.mxu0 %v35
    %60 = vmatpush.msra.mxu0 %v34
    %61 = vmatpush.msra.mxu0 %v33
    %62 = vmatpush.msra.mxu0 %v32
    %63 = vmatmul.f32.gmra.mxu0 %v42
    %v64 = vpop.f32.mrf.mxu0
    %v65 = vadd.f32 %v38, %v64
    %66 = vmatmul.f32.gmra.mxu0 %v45
    %v67 = vpop.f32.mrf.mxu0
    %v68 = vadd.f32 %v38, %v67
    %69 = vdwg.mxu0
    %72 = vrot.lane.b32.xlu0 %v65, 120
    %v73 = vpop.permute.xlu0 %72
    %74 = vrot.lane.b32.xlu0 %v68, 120
    %v75 = vpop.permute.xlu0 %74
    %76 = vrot.lane.b32.xlu0 %v65, 112
    %v77 = vpop.permute.xlu0 %76
    %78 = vrot.lane.b32.xlu0 %v68, 112
    %v79 = vpop.permute.xlu0 %78
    %80 = vrot.lane.b32.xlu0 %v65, 104
    %v81 = vpop.permute.xlu0 %80
    %82 = vrot.lane.b32.xlu0 %v68, 104
    %v83 = vpop.permute.xlu0 %82
    %84 = vrot.lane.b32.xlu0 %v65, 96
    %v85 = vpop.permute.xlu0 %84
    %vm86 = vcmask 64512
    %v87 = vsel %vm86, %v65, 0
    %v89 = vsel %vm86, %v85, 0
    %91 = vmatpush.xpose.msra.mxu0 0.0
    %92 = vmatpush.xpose.msra.mxu0 0.0
    %93 = vmatpush.xpose.msra.mxu0 0.0
    %94 = vmatpush.xpose.msra.mxu0 0.0
    %95 = vmatpush.xpose.msra.mxu0 0.0
    %96 = vmatpush.xpose.msra.mxu0 0.0
    %97 = vmatpush.xpose.msra.mxu0 0.0
    %98 = vmatpush.xpose.msra.mxu0 0.0
    %99 = vmatpush.xpose.msra.mxu0 0.0
    %100 = vmatpush.xpose.msra.mxu0 0.0
    %101 = vmatpush.xpose.msra.mxu0 0.0
    %102 = vmatpush.xpose.msra.mxu0 0.0
    %103 = vmatpush.xpose.msra.mxu0 0.0
    %104 = vmatpush.xpose.msra.mxu0 0.0
    %105 = vmatpush.xpose.msra.mxu0 0.0
    %106 = vmatpush.xpose.msra.mxu0 %v89
    %107 = vmatmul.f32.gmra.mxu0 %v87
    %v108 = vpop.f32.mrf.mxu0
    %v109 = vadd.f32 0.0, %v108
    %110 = vdwg.mxu0
    %111 = vrot.lane.b32.xlu0 %v68, 96
    %v112 = vpop.permute.xlu0 %111
    %v113 = vsel %vm86, %v68, 0
    %v115 = vsel %vm86, %v112, 0
    %117 = vmatpush.xpose.msra.mxu0 0.0
    %118 = vmatpush.xpose.msra.mxu0 0.0
    %119 = vmatpush.xpose.msra.mxu0 0.0
    %120 = vmatpush.xpose.msra.mxu0 0.0
    %121 = vmatpush.xpose.msra.mxu0 0.0
    %122 = vmatpush.xpose.msra.mxu0 0.0
    %123 = vmatpush.xpose.msra.mxu0 0.0
    %124 = vmatpush.xpose.msra.mxu0 0.0
    %125 = vmatpush.xpose.msra.mxu0 0.0
    %126 = vmatpush.xpose.msra.mxu0 0.0
    %127 = vmatpush.xpose.msra.mxu0 0.0
    %128 = vmatpush.xpose.msra.mxu0 0.0
    %129 = vmatpush.xpose.msra.mxu0 0.0
    %130 = vmatpush.xpose.msra.mxu0 0.0
    %131 = vmatpush.xpose.msra.mxu0 0.0
    %132 = vmatpush.xpose.msra.mxu0 %v115
    %133 = vmatmul.f32.gmra.mxu0 %v113
    %v134 = vpop.f32.mrf.mxu0
    %v135 = vadd.f32 0.0, %v134
    %136 = vdwg.mxu0
    %137 = vrot.lane.b32.xlu0 %v73, 96
    %v138 = vpop.permute.xlu0 %137
    %v139 = vsel %vm86, %v73, 0
    %v141 = vsel %vm86, %v138, 0
    %143 = vmatpush.xpose.msra.mxu0 0.0
    %144 = vmatpush.xpose.msra.mxu0 0.0
    %145 = vmatpush.xpose.msra.mxu0 0.0
    %146 = vmatpush.xpose.msra.mxu0 0.0
    %147 = vmatpush.xpose.msra.mxu0 0.0
    %148 = vmatpush.xpose.msra.mxu0 0.0
    %149 = vmatpush.xpose.msra.mxu0 0.0
    %150 = vmatpush.xpose.msra.mxu0 0.0
    %151 = vmatpush.xpose.msra.mxu0 0.0
    %152 = vmatpush.xpose.msra.mxu0 0.0
    %153 = vmatpush.xpose.msra.mxu0 0.0
    %154 = vmatpush.xpose.msra.mxu0 0.0
    %155 = vmatpush.xpose.msra.mxu0 0.0
    %156 = vmatpush.xpose.msra.mxu0 0.0
    %157 = vmatpush.xpose.msra.mxu0 0.0
    %158 = vmatpush.xpose.msra.mxu0 %v141
    %159 = vmatmul.f32.gmra.mxu0 %v139
    %v160 = vpop.f32.mrf.mxu0
    %v161 = vadd.f32 0.0, %v160
    %162 = vdwg.mxu0
    %163 = vrot.lane.b32.xlu0 %v75, 96
    %v164 = vpop.permute.xlu0 %163
    %v165 = vsel %vm86, %v75, 0
    %v167 = vsel %vm86, %v164, 0
    %169 = vmatpush.xpose.msra.mxu0 0.0
    %170 = vmatpush.xpose.msra.mxu0 0.0
    %171 = vmatpush.xpose.msra.mxu0 0.0
    %172 = vmatpush.xpose.msra.mxu0 0.0
    %173 = vmatpush.xpose.msra.mxu0 0.0
    %174 = vmatpush.xpose.msra.mxu0 0.0
    %175 = vmatpush.xpose.msra.mxu0 0.0
    %176 = vmatpush.xpose.msra.mxu0 0.0
    %177 = vmatpush.xpose.msra.mxu0 0.0
    %178 = vmatpush.xpose.msra.mxu0 0.0
    %179 = vmatpush.xpose.msra.mxu0 0.0
    %180 = vmatpush.xpose.msra.mxu0 0.0
    %181 = vmatpush.xpose.msra.mxu0 0.0
    %182 = vmatpush.xpose.msra.mxu0 0.0
    %183 = vmatpush.xpose.msra.mxu0 0.0
    %184 = vmatpush.xpose.msra.mxu0 %v167
    %185 = vmatmul.f32.gmra.mxu0 %v165
    %v186 = vpop.f32.mrf.mxu0
    %v187 = vadd.f32 0.0, %v186
    %188 = vdwg.mxu0
    %189 = vrot.lane.b32.xlu0 %v77, 96
    %v190 = vpop.permute.xlu0 %189
    %v191 = vsel %vm86, %v77, 0
    %v193 = vsel %vm86, %v190, 0
    %195 = vmatpush.xpose.msra.mxu0 0.0
    %196 = vmatpush.xpose.msra.mxu0 0.0
    %197 = vmatpush.xpose.msra.mxu0 0.0
    %198 = vmatpush.xpose.msra.mxu0 0.0
    %199 = vmatpush.xpose.msra.mxu0 0.0
    %200 = vmatpush.xpose.msra.mxu0 0.0
    %201 = vmatpush.xpose.msra.mxu0 0.0
    %202 = vmatpush.xpose.msra.mxu0 0.0
    %203 = vmatpush.xpose.msra.mxu0 0.0
    %204 = vmatpush.xpose.msra.mxu0 0.0
    %205 = vmatpush.xpose.msra.mxu0 0.0
    %206 = vmatpush.xpose.msra.mxu0 0.0
    %207 = vmatpush.xpose.msra.mxu0 0.0
    %208 = vmatpush.xpose.msra.mxu0 0.0
    %209 = vmatpush.xpose.msra.mxu0 0.0
    %210 = vmatpush.xpose.msra.mxu0 %v193
    %211 = vmatmul.f32.gmra.mxu0 %v191
    %v212 = vpop.f32.mrf.mxu0
    %v213 = vadd.f32 0.0, %v212
    %214 = vdwg.mxu0
    %215 = vrot.lane.b32.xlu0 %v79, 96
    %v216 = vpop.permute.xlu0 %215
    %v217 = vsel %vm86, %v79, 0
    %v219 = vsel %vm86, %v216, 0
    %221 = vmatpush.xpose.msra.mxu0 0.0
    %222 = vmatpush.xpose.msra.mxu0 0.0
    %223 = vmatpush.xpose.msra.mxu0 0.0
    %224 = vmatpush.xpose.msra.mxu0 0.0
    %225 = vmatpush.xpose.msra.mxu0 0.0
    %226 = vmatpush.xpose.msra.mxu0 0.0
    %227 = vmatpush.xpose.msra.mxu0 0.0
    %228 = vmatpush.xpose.msra.mxu0 0.0
    %229 = vmatpush.xpose.msra.mxu0 0.0
    %230 = vmatpush.xpose.msra.mxu0 0.0
    %231 = vmatpush.xpose.msra.mxu0 0.0
    %232 = vmatpush.xpose.msra.mxu0 0.0
    %233 = vmatpush.xpose.msra.mxu0 0.0
    %234 = vmatpush.xpose.msra.mxu0 0.0
    %235 = vmatpush.xpose.msra.mxu0 0.0
    %236 = vmatpush.xpose.msra.mxu0 %v219
    %237 = vmatmul.f32.gmra.mxu0 %v217
    %v238 = vpop.f32.mrf.mxu0
    %v239 = vadd.f32 0.0, %v238
    %240 = vdwg.mxu0
    %241 = vrot.lane.b32.xlu0 %v81, 96
    %v242 = vpop.permute.xlu0 %241
    %v243 = vsel %vm86, %v81, 0
    %v245 = vsel %vm86, %v242, 0
    %247 = vmatpush.xpose.msra.mxu0 0.0
    %248 = vmatpush.xpose.msra.mxu0 0.0
    %249 = vmatpush.xpose.msra.mxu0 0.0
    %250 = vmatpush.xpose.msra.mxu0 0.0
    %251 = vmatpush.xpose.msra.mxu0 0.0
    %252 = vmatpush.xpose.msra.mxu0 0.0
    %253 = vmatpush.xpose.msra.mxu0 0.0
    %254 = vmatpush.xpose.msra.mxu0 0.0
    %255 = vmatpush.xpose.msra.mxu0 0.0
    %256 = vmatpush.xpose.msra.mxu0 0.0
    %257 = vmatpush.xpose.msra.mxu0 0.0
    %258 = vmatpush.xpose.msra.mxu0 0.0
    %259 = vmatpush.xpose.msra.mxu0 0.0
    %260 = vmatpush.xpose.msra.mxu0 0.0
    %261 = vmatpush.xpose.msra.mxu0 0.0
    %262 = vmatpush.xpose.msra.mxu0 %v245
    %263 = vmatmul.f32.gmra.mxu0 %v243
    %v264 = vpop.f32.mrf.mxu0
    %v265 = vadd.f32 0.0, %v264
    %266 = vdwg.mxu0
    %267 = vrot.lane.b32.xlu0 %v83, 96
    %v268 = vpop.permute.xlu0 %267
    %v269 = vsel %vm86, %v83, 0
    %v271 = vsel %vm86, %v268, 0
    %273 = vmatpush.xpose.msra.mxu0 0.0
    %274 = vmatpush.xpose.msra.mxu0 0.0
    %275 = vmatpush.xpose.msra.mxu0 0.0
    %276 = vmatpush.xpose.msra.mxu0 0.0
    %277 = vmatpush.xpose.msra.mxu0 0.0
    %278 = vmatpush.xpose.msra.mxu0 0.0
    %279 = vmatpush.xpose.msra.mxu0 0.0
    %280 = vmatpush.xpose.msra.mxu0 0.0
    %281 = vmatpush.xpose.msra.mxu0 0.0
    %282 = vmatpush.xpose.msra.mxu0 0.0
    %283 = vmatpush.xpose.msra.mxu0 0.0
    %284 = vmatpush.xpose.msra.mxu0 0.0
    %285 = vmatpush.xpose.msra.mxu0 0.0
    %286 = vmatpush.xpose.msra.mxu0 0.0
    %287 = vmatpush.xpose.msra.mxu0 0.0
    %288 = vmatpush.xpose.msra.mxu0 %v271
    %289 = vmatmul.f32.gmra.mxu0 %v269
    %v290 = vpop.f32.mrf.mxu0
    %v291 = vadd.f32 0.0, %v290
    %292 = vdwg.mxu0
    %v293 = vsel %vm86, %v109, -inf
    %294 = vmax.xlane.f32.xlu0 %v293
    %v295 = vpop.xlane.xlu0 %294
    %v296 = vsel %vm86, %v135, -inf
    %297 = vmax.xlane.f32.xlu0 %v296
    %v298 = vpop.xlane.xlu0 %297
    %v299 = vsel %vm86, %v161, -inf
    %300 = vmax.xlane.f32.xlu0 %v299
    %v301 = vpop.xlane.xlu0 %300
    %v302 = vsel %vm86, %v187, -inf
    %303 = vmax.xlane.f32.xlu0 %v302
    %v304 = vpop.xlane.xlu0 %303
    %v305 = vsel %vm86, %v213, -inf
    %306 = vmax.xlane.f32.xlu0 %v305
    %v307 = vpop.xlane.xlu0 %306
    %v308 = vsel %vm86, %v239, -inf
    %309 = vmax.xlane.f32.xlu0 %v308
    %v310 = vpop.xlane.xlu0 %309
    %v311 = vsel %vm86, %v265, -inf
    %312 = vmax.xlane.f32.xlu0 %v311
    %v313 = vpop.xlane.xlu0 %312
    %v314 = vsel %vm86, %v291, -inf
    %315 = vmax.xlane.f32.xlu0 %v314
    %v316 = vpop.xlane.xlu0 %315
    %v317 = vsub.f32 %v109, %v295
    %v318 = vsub.f32 %v135, %v298
    %v319 = vsub.f32 %v161, %v301
    %v320 = vsub.f32 %v187, %v304
    %v321 = vsub.f32 %v213, %v307
    %v322 = vsub.f32 %v239, %v310
    %v323 = vsub.f32 %v265, %v313
    %v324 = vsub.f32 %v291, %v316
    %v325 = vmul.f32 %v317, 1.442695
    %v326 = vpow.pop %v325
    %v327 = vmul.f32 %v318, 1.442695
    %v328 = vpow.pop %v327
    %v329 = vmul.f32 %v319, 1.442695
    %v330 = vpow.pop %v329
    %v331 = vmul.f32 %v320, 1.442695
    %v332 = vpow.pop %v331
    %v333 = vmul.f32 %v321, 1.442695
    %v334 = vpow.pop %v333
    %v335 = vmul.f32 %v322, 1.442695
    %v336 = vpow.pop %v335
    %v337 = vmul.f32 %v323, 1.442695
    %v338 = vpow.pop %v337
    %v339 = vmul.f32 %v324, 1.442695
    %v340 = vpow.pop %v339
    %v341 = vsel %vm86, %v326, 0.0
    %342 = vadd.xlane.f32.xlu0 %v341
    %v343 = vpop.xlane.xlu0 %342
    %v344 = vsel %vm86, %v328, 0.0
    %345 = vadd.xlane.f32.xlu0 %v344
    %v346 = vpop.xlane.xlu0 %345
    %v347 = vsel %vm86, %v330, 0.0
    %348 = vadd.xlane.f32.xlu0 %v347
    %v349 = vpop.xlane.xlu0 %348
    %v350 = vsel %vm86, %v332, 0.0
    %351 = vadd.xlane.f32.xlu0 %v350
    %v352 = vpop.xlane.xlu0 %351
    %v353 = vsel %vm86, %v334, 0.0
    %354 = vadd.xlane.f32.xlu0 %v353
    %v355 = vpop.xlane.xlu0 %354
    %v356 = vsel %vm86, %v336, 0.0
    %357 = vadd.xlane.f32.xlu0 %v356
    %v358 = vpop.xlane.xlu0 %357
    %v359 = vsel %vm86, %v338, 0.0
    %360 = vadd.xlane.f32.xlu0 %v359
    %v361 = vpop.xlane.xlu0 %360
    %v362 = vsel %vm86, %v340, 0.0
    %363 = vadd.xlane.f32.xlu0 %v362
    %v364 = vpop.xlane.xlu0 %363
    %v365 = vrcp.pop %v343
    %v366 = vmul.f32 %v343, %v365
    %v367 = vsub.f32 1.0, %v366
    %v368 = vmul.f32 %v365, %v367
    %v369 = vadd.f32 %v365, %v368
    %vm370 = vweird.f32 %v343
    %vm371 = vweird.f32 %v365
    %vm372 = vmor %vm370, %vm371
    %v373 = vsel %vm372, %v365, %v369
    %v374 = vand.u32 2147483647, %v343
    %vm375 = vcmp.eq.f32.partialorder %v374, 8.507059e+37
    %v376 = vand.u32 %v343, 2147483648
    %v377 = vor.u32 1.1754944e-38, %v376
    %v378 = vsel %vm375, %v377, %v373
    %v379 = vmul.f32 %v326, %v378
    %v380 = vrcp.pop %v346
    %v381 = vmul.f32 %v346, %v380
    %v382 = vsub.f32 1.0, %v381
    %v383 = vmul.f32 %v380, %v382
    %v384 = vadd.f32 %v380, %v383
    %vm385 = vweird.f32 %v346
    %vm386 = vweird.f32 %v380
    %vm387 = vmor %vm385, %vm386
    %v388 = vsel %vm387, %v380, %v384
    %v389 = vand.u32 2147483647, %v346
    %vm390 = vcmp.eq.f32.partialorder %v389, 8.507059e+37
    %v391 = vand.u32 %v346, 2147483648
    %v392 = vor.u32 1.1754944e-38, %v391
    %v393 = vsel %vm390, %v392, %v388
    %v394 = vmul.f32 %v328, %v393
    %v395 = vrcp.pop %v349
    %v396 = vmul.f32 %v349, %v395
    %v397 = vsub.f32 1.0, %v396
    %v398 = vmul.f32 %v395, %v397
    %v399 = vadd.f32 %v395, %v398
    %vm400 = vweird.f32 %v349
    %vm401 = vweird.f32 %v395
    %vm402 = vmor %vm400, %vm401
    %v403 = vsel %vm402, %v395, %v399
    %v404 = vand.u32 2147483647, %v349
    %vm405 = vcmp.eq.f32.partialorder %v404, 8.507059e+37
    %v406 = vand.u32 %v349, 2147483648
    %v407 = vor.u32 1.1754944e-38, %v406
    %v408 = vsel %vm405, %v407, %v403
    %v409 = vmul.f32 %v330, %v408
    %v410 = vrcp.pop %v352
    %v411 = vmul.f32 %v352, %v410
    %v412 = vsub.f32 1.0, %v411
    %v413 = vmul.f32 %v410, %v412
    %v414 = vadd.f32 %v410, %v413
    %vm415 = vweird.f32 %v352
    %vm416 = vweird.f32 %v410
    %vm417 = vmor %vm415, %vm416
    %v418 = vsel %vm417, %v410, %v414
    %v419 = vand.u32 2147483647, %v352
    %vm420 = vcmp.eq.f32.partialorder %v419, 8.507059e+37
    %v421 = vand.u32 %v352, 2147483648
    %v422 = vor.u32 1.1754944e-38, %v421
    %v423 = vsel %vm420, %v422, %v418
    %v424 = vmul.f32 %v332, %v423
    %v425 = vrcp.pop %v355
    %v426 = vmul.f32 %v355, %v425
    %v427 = vsub.f32 1.0, %v426
    %v428 = vmul.f32 %v425, %v427
    %v429 = vadd.f32 %v425, %v428
    %vm430 = vweird.f32 %v355
    %vm431 = vweird.f32 %v425
    %vm432 = vmor %vm430, %vm431
    %v433 = vsel %vm432, %v425, %v429
    %v434 = vand.u32 2147483647, %v355
    %vm435 = vcmp.eq.f32.partialorder %v434, 8.507059e+37
    %v436 = vand.u32 %v355, 2147483648
    %v437 = vor.u32 1.1754944e-38, %v436
    %v438 = vsel %vm435, %v437, %v433
    %v439 = vmul.f32 %v334, %v438
    %v440 = vrcp.pop %v358
    %v441 = vmul.f32 %v358, %v440
    %v442 = vsub.f32 1.0, %v441
    %v443 = vmul.f32 %v440, %v442
    %v444 = vadd.f32 %v440, %v443
    %vm445 = vweird.f32 %v358
    %vm446 = vweird.f32 %v440
    %vm447 = vmor %vm445, %vm446
    %v448 = vsel %vm447, %v440, %v444
    %v449 = vand.u32 2147483647, %v358
    %vm450 = vcmp.eq.f32.partialorder %v449, 8.507059e+37
    %v451 = vand.u32 %v358, 2147483648
    %v452 = vor.u32 1.1754944e-38, %v451
    %v453 = vsel %vm450, %v452, %v448
    %v454 = vmul.f32 %v336, %v453
    %v455 = vrcp.pop %v361
    %v456 = vmul.f32 %v361, %v455
    %v457 = vsub.f32 1.0, %v456
    %v458 = vmul.f32 %v455, %v457
    %v459 = vadd.f32 %v455, %v458
    %vm460 = vweird.f32 %v361
    %vm461 = vweird.f32 %v455
    %vm462 = vmor %vm460, %vm461
    %v463 = vsel %vm462, %v455, %v459
    %v464 = vand.u32 2147483647, %v361
    %vm465 = vcmp.eq.f32.partialorder %v464, 8.507059e+37
    %v466 = vand.u32 %v361, 2147483648
    %v467 = vor.u32 1.1754944e-38, %v466
    %v468 = vsel %vm465, %v467, %v463
    %v469 = vmul.f32 %v338, %v468
    %v470 = vrcp.pop %v364
    %v471 = vmul.f32 %v364, %v470
    %v472 = vsub.f32 1.0, %v471
    %v473 = vmul.f32 %v470, %v472
    %v474 = vadd.f32 %v470, %v473
    %vm475 = vweird.f32 %v364
    %vm476 = vweird.f32 %v470
    %vm477 = vmor %vm475, %vm476
    %v478 = vsel %vm477, %v470, %v474
    %v479 = vand.u32 2147483647, %v364
    %vm480 = vcmp.eq.f32.partialorder %v479, 8.507059e+37
    %v481 = vand.u32 %v364, 2147483648
    %v482 = vor.u32 1.1754944e-38, %v481
    %v483 = vsel %vm480, %v482, %v478
    %v484 = vmul.f32 %v340, %v483
    %485 = vrot.lane.b32.xlu0 %v65, 64
    %v486 = vpop.permute.xlu0 %485
    %v489 = vsel %vm86, %v379, 0
    %491 = vmatpush.msra.mxu0 0.0
    %492 = vmatpush.msra.mxu0 0.0
    %493 = vmatpush.msra.mxu0 0.0
    %494 = vmatpush.msra.mxu0 0.0
    %495 = vmatpush.msra.mxu0 0.0
    %496 = vmatpush.msra.mxu0 0.0
    %497 = vmatpush.msra.mxu0 0.0
    %498 = vmatpush.msra.mxu0 0.0
    %499 = vmatpush.msra.mxu0 0.0
    %500 = vmatpush.msra.mxu0 0.0
    %501 = vmatpush.msra.mxu0 0.0
    %502 = vmatpush.msra.mxu0 0.0
    %503 = vmatpush.msra.mxu0 0.0
    %504 = vmatpush.msra.mxu0 0.0
    %505 = vmatpush.msra.mxu0 0.0
    %506 = vmatpush.msra.mxu0 %v486
    %507 = vmatmul.f32.gmra.mxu0 %v489
    %v508 = vpop.f32.mrf.mxu0
    %v509 = vadd.f32 0.0, %v508
    %510 = vdwg.mxu0
    %511 = vrot.lane.b32.xlu0 %v68, 64
    %v512 = vpop.permute.xlu0 %511
    %v515 = vsel %vm86, %v394, 0
    %517 = vmatpush.msra.mxu0 0.0
    %518 = vmatpush.msra.mxu0 0.0
    %519 = vmatpush.msra.mxu0 0.0
    %520 = vmatpush.msra.mxu0 0.0
    %521 = vmatpush.msra.mxu0 0.0
    %522 = vmatpush.msra.mxu0 0.0
    %523 = vmatpush.msra.mxu0 0.0
    %524 = vmatpush.msra.mxu0 0.0
    %525 = vmatpush.msra.mxu0 0.0
    %526 = vmatpush.msra.mxu0 0.0
    %527 = vmatpush.msra.mxu0 0.0
    %528 = vmatpush.msra.mxu0 0.0
    %529 = vmatpush.msra.mxu0 0.0
    %530 = vmatpush.msra.mxu0 0.0
    %531 = vmatpush.msra.mxu0 0.0
    %532 = vmatpush.msra.mxu0 %v512
    %533 = vmatmul.f32.gmra.mxu0 %v515
    %v534 = vpop.f32.mrf.mxu0
    %v535 = vadd.f32 0.0, %v534
    %536 = vdwg.mxu0
    %537 = vrot.lane.b32.xlu0 %v73, 64
    %v538 = vpop.permute.xlu0 %537
    %v541 = vsel %vm86, %v409, 0
    %543 = vmatpush.msra.mxu0 0.0
    %544 = vmatpush.msra.mxu0 0.0
    %545 = vmatpush.msra.mxu0 0.0
    %546 = vmatpush.msra.mxu0 0.0
    %547 = vmatpush.msra.mxu0 0.0
    %548 = vmatpush.msra.mxu0 0.0
    %549 = vmatpush.msra.mxu0 0.0
    %550 = vmatpush.msra.mxu0 0.0
    %551 = vmatpush.msra.mxu0 0.0
    %552 = vmatpush.msra.mxu0 0.0
    %553 = vmatpush.msra.mxu0 0.0
    %554 = vmatpush.msra.mxu0 0.0
    %555 = vmatpush.msra.mxu0 0.0
    %556 = vmatpush.msra.mxu0 0.0
    %557 = vmatpush.msra.mxu0 0.0
    %558 = vmatpush.msra.mxu0 %v538
    %559 = vmatmul.f32.gmra.mxu0 %v541
    %v560 = vpop.f32.mrf.mxu0
    %v561 = vadd.f32 0.0, %v560
    %562 = vdwg.mxu0
    %563 = vrot.lane.b32.xlu0 %v75, 64
    %v564 = vpop.permute.xlu0 %563
    %v567 = vsel %vm86, %v424, 0
    %569 = vmatpush.msra.mxu0 0.0
    %570 = vmatpush.msra.mxu0 0.0
    %571 = vmatpush.msra.mxu0 0.0
    %572 = vmatpush.msra.mxu0 0.0
    %573 = vmatpush.msra.mxu0 0.0
    %574 = vmatpush.msra.mxu0 0.0
    %575 = vmatpush.msra.mxu0 0.0
    %576 = vmatpush.msra.mxu0 0.0
    %577 = vmatpush.msra.mxu0 0.0
    %578 = vmatpush.msra.mxu0 0.0
    %579 = vmatpush.msra.mxu0 0.0
    %580 = vmatpush.msra.mxu0 0.0
    %581 = vmatpush.msra.mxu0 0.0
    %582 = vmatpush.msra.mxu0 0.0
    %583 = vmatpush.msra.mxu0 0.0
    %584 = vmatpush.msra.mxu0 %v564
    %585 = vmatmul.f32.gmra.mxu0 %v567
    %v586 = vpop.f32.mrf.mxu0
    %v587 = vadd.f32 0.0, %v586
    %588 = vdwg.mxu0
    %589 = vrot.lane.b32.xlu0 %v77, 64
    %v590 = vpop.permute.xlu0 %589
    %v593 = vsel %vm86, %v439, 0
    %595 = vmatpush.msra.mxu0 0.0
    %596 = vmatpush.msra.mxu0 0.0
    %597 = vmatpush.msra.mxu0 0.0
    %598 = vmatpush.msra.mxu0 0.0
    %599 = vmatpush.msra.mxu0 0.0
    %600 = vmatpush.msra.mxu0 0.0
    %601 = vmatpush.msra.mxu0 0.0
    %602 = vmatpush.msra.mxu0 0.0
    %603 = vmatpush.msra.mxu0 0.0
    %604 = vmatpush.msra.mxu0 0.0
    %605 = vmatpush.msra.mxu0 0.0
    %606 = vmatpush.msra.mxu0 0.0
    %607 = vmatpush.msra.mxu0 0.0
    %608 = vmatpush.msra.mxu0 0.0
    %609 = vmatpush.msra.mxu0 0.0
    %610 = vmatpush.msra.mxu0 %v590
    %611 = vmatmul.f32.gmra.mxu0 %v593
    %v612 = vpop.f32.mrf.mxu0
    %v613 = vadd.f32 0.0, %v612
    %614 = vdwg.mxu0
    %615 = vrot.lane.b32.xlu0 %v79, 64
    %v616 = vpop.permute.xlu0 %615
    %v619 = vsel %vm86, %v454, 0
    %621 = vmatpush.msra.mxu0 0.0
    %622 = vmatpush.msra.mxu0 0.0
    %623 = vmatpush.msra.mxu0 0.0
    %624 = vmatpush.msra.mxu0 0.0
    %625 = vmatpush.msra.mxu0 0.0
    %626 = vmatpush.msra.mxu0 0.0
    %627 = vmatpush.msra.mxu0 0.0
    %628 = vmatpush.msra.mxu0 0.0
    %629 = vmatpush.msra.mxu0 0.0
    %630 = vmatpush.msra.mxu0 0.0
    %631 = vmatpush.msra.mxu0 0.0
    %632 = vmatpush.msra.mxu0 0.0
    %633 = vmatpush.msra.mxu0 0.0
    %634 = vmatpush.msra.mxu0 0.0
    %635 = vmatpush.msra.mxu0 0.0
    %636 = vmatpush.msra.mxu0 %v616
    %637 = vmatmul.f32.gmra.mxu0 %v619
    %v638 = vpop.f32.mrf.mxu0
    %v639 = vadd.f32 0.0, %v638
    %640 = vdwg.mxu0
    %641 = vrot.lane.b32.xlu0 %v81, 64
    %v642 = vpop.permute.xlu0 %641
    %v645 = vsel %vm86, %v469, 0
    %647 = vmatpush.msra.mxu0 0.0
    %648 = vmatpush.msra.mxu0 0.0
    %649 = vmatpush.msra.mxu0 0.0
    %650 = vmatpush.msra.mxu0 0.0
    %651 = vmatpush.msra.mxu0 0.0
    %652 = vmatpush.msra.mxu0 0.0
    %653 = vmatpush.msra.mxu0 0.0
    %654 = vmatpush.msra.mxu0 0.0
    %655 = vmatpush.msra.mxu0 0.0
    %656 = vmatpush.msra.mxu0 0.0
    %657 = vmatpush.msra.mxu0 0.0
    %658 = vmatpush.msra.mxu0 0.0
    %659 = vmatpush.msra.mxu0 0.0
    %660 = vmatpush.msra.mxu0 0.0
    %661 = vmatpush.msra.mxu0 0.0
    %662 = vmatpush.msra.mxu0 %v642
    %663 = vmatmul.f32.gmra.mxu0 %v645
    %v664 = vpop.f32.mrf.mxu0
    %v665 = vadd.f32 0.0, %v664
    %666 = vdwg.mxu0
    %667 = vrot.lane.b32.xlu0 %v83, 64
    %v668 = vpop.permute.xlu0 %667
    %v671 = vsel %vm86, %v484, 0
    %673 = vmatpush.msra.mxu0 0.0
    %674 = vmatpush.msra.mxu0 0.0
    %675 = vmatpush.msra.mxu0 0.0
    %676 = vmatpush.msra.mxu0 0.0
    %677 = vmatpush.msra.mxu0 0.0
    %678 = vmatpush.msra.mxu0 0.0
    %679 = vmatpush.msra.mxu0 0.0
    %680 = vmatpush.msra.mxu0 0.0
    %681 = vmatpush.msra.mxu0 0.0
    %682 = vmatpush.msra.mxu0 0.0
    %683 = vmatpush.msra.mxu0 0.0
    %684 = vmatpush.msra.mxu0 0.0
    %685 = vmatpush.msra.mxu0 0.0
    %686 = vmatpush.msra.mxu0 0.0
    %687 = vmatpush.msra.mxu0 0.0
    %688 = vmatpush.msra.mxu0 %v668
    %689 = vmatmul.f32.gmra.mxu0 %v671
    %v690 = vpop.f32.mrf.mxu0
    %v691 = vadd.f32 0.0, %v690
    %692 = vdwg.mxu0
    %695 = vrot.lane.b32.xlu0 %v561, 8
    %v696 = vpop.permute.xlu0 %695
    %697 = vrot.lane.b32.xlu0 %v587, 8
    %v698 = vpop.permute.xlu0 %697
    %703 = vrot.lane.b32.xlu0 %v613, 16
    %v704 = vpop.permute.xlu0 %703
    %705 = vrot.lane.b32.xlu0 %v639, 16
    %v706 = vpop.permute.xlu0 %705
    %711 = vrot.lane.b32.xlu0 %v665, 24
    %v712 = vpop.permute.xlu0 %711
    %713 = vrot.lane.b32.xlu0 %v691, 24
    %v714 = vpop.permute.xlu0 %713
    %v717 = vsel %vm86, %v509, %v696
    %v718 = vsel %vm86, %v535, %v698
    %vm719 = vcmask 130048
    %v720 = vsel %vm719, %v717, %v704
    %v721 = vsel %vm719, %v718, %v706
    %vm722 = vcmask 195584
    %v723 = vsel %vm722, %v720, %v712
    %v724 = vsel %vm722, %v721, %v714
    %v725 = vsel %vm40, %v723, 0.0
    %726 = vadd.xlane.f32.xlu0 %v725
    %v727 = vpop.xlane.xlu0 %726
    %v728 = vsel %vm40, %v724, 0.0
    %729 = vadd.xlane.f32.xlu0 %v728
    %v730 = vpop.xlane.xlu0 %729
    %v731 = vrcp.pop 32.0
    %v732 = vmul.f32 32.0, %v731
    %v733 = vsub.f32 1.0, %v732
    %v734 = vmul.f32 %v731, %v733
    %v735 = vadd.f32 %v731, %v734
    %vm736 = vweird.f32 %v731
    %v737 = vsel %vm736, %v731, %v735
    %v738 = vmul.f32 %v727, %v737
    %v739 = vmul.f32 %v730, %v737
    %v740 = vsub.f32 %v723, %v738
    %v741 = vsub.f32 %v724, %v739
    %v742 = vmul.f32 %v740, %v740
    %v743 = vmul.f32 %v741, %v741
    %v744 = vsel %vm40, %v742, 0.0
    %745 = vadd.xlane.f32.xlu0 %v744
    %v746 = vpop.xlane.xlu0 %745
    %v747 = vsel %vm40, %v743, 0.0
    %748 = vadd.xlane.f32.xlu0 %v747
    %v749 = vpop.xlane.xlu0 %748
    %v750 = vmul.f32 %v746, %v737
    %v751 = vmul.f32 %v749, %v737
    %v752 = vadd.f32 %v750, 1e-05
    %v753 = vadd.f32 %v751, 1e-05
    %v754 = vrsqrt.pop %v752
    %v755 = vmul.f32 %v754, %v752
    %v756 = vmul.f32 %v755, %v754
    %v757 = vmul.f32 0.5, %v756
    %v758 = vsub.f32 1.5, %v757
    %v759 = vmul.f32 %v754, %v758
    %vm760 = vweird.f32 %v752
    %vm761 = vweird.f32 %v754
    %vm762 = vmor %vm760, %vm761
    %v763 = vsel %vm762, %v754, %v759
    %v764 = vrsqrt.pop %v753
    %v765 = vmul.f32 %v764, %v753
    %v766 = vmul.f32 %v765, %v764
    %v767 = vmul.f32 0.5, %v766
    %v768 = vsub.f32 1.5, %v767
    %v769 = vmul.f32 %v764, %v768
    %vm770 = vweird.f32 %v753
    %vm771 = vweird.f32 %v764
    %vm772 = vmor %vm770, %vm771
    %v773 = vsel %vm772, %v764, %v769
    %v774 = vmul.f32 %v740, %v763
    %v775 = vmul.f32 %v741, %v773
    %v776 = vld [vmem:[%s3] sm:$0x1]
    %v778 = vperm.slane %v776, 0
    %v780 = vmul.f32 %v774, %v778
    %v781 = vmul.f32 %v775, %v778
    %v782 = vld [vmem:[%s4] sm:$0x1]
    %v784 = vperm.slane %v782, 0
    %v786 = vadd.f32 %v780, %v784
    %v787 = vadd.f32 %v781, %v784
    %v788 = vld [vmem:[%s5] sm:$0xff]
    %v789 = vld [vmem:[%s5 + $0x8] sm:$0xff]
    %v790 = vld [vmem:[%s5 + $0x10] sm:$0xff]
    %v791 = vld [vmem:[%s5 + $0x18] sm:$0xff]
    %v792 = vld [vmem:[%s6] sm:$0x1]
    %v794 = vperm.slane %v792, 0
    %v797 = vsel %vm40, %v786, 0
    %v800 = vsel %vm40, %v787, 0
    %802 = vmatpush.msra.mxu0 0.0
    %803 = vmatpush.msra.mxu0 0.0
    %804 = vmatpush.msra.mxu0 0.0
    %805 = vmatpush.msra.mxu0 0.0
    %806 = vmatpush.msra.mxu0 0.0
    %807 = vmatpush.msra.mxu0 0.0
    %808 = vmatpush.msra.mxu0 0.0
    %809 = vmatpush.msra.mxu0 0.0
    %810 = vmatpush.msra.mxu0 0.0
    %811 = vmatpush.msra.mxu0 0.0
    %812 = vmatpush.msra.mxu0 0.0
    %813 = vmatpush.msra.mxu0 0.0
    %814 = vmatpush.msra.mxu0 %v791
    %815 = vmatpush.msra.mxu0 %v790
    %816 = vmatpush.msra.mxu0 %v789
    %817 = vmatpush.msra.mxu0 %v788
    %818 = vmatmul.f32.gmra.mxu0 %v797
    %v819 = vpop.f32.mrf.mxu0
    %v820 = vadd.f32 %v794, %v819
    %821 = vmatmul.f32.gmra.mxu0 %v800
    %v822 = vpop.f32.mrf.mxu0
    %v823 = vadd.f32 %v794, %v822
    %824 = vdwg.mxu0
    %v825 = vtanh.pop %v820
    %v826 = vtanh.pop %v823
    %v827 = vld [vmem:[%s7] sm:$0x1]
    %v829 = vperm.slane %v827, 0
    %v831 = vmul.f32 %v825, %v829
    %v832 = vmul.f32 %v826, %v829
    %v833 = vsel %vm719, %v831, 0.0
    %834 = vadd.xlane.f32.xlu0 %v833
    %v835 = vpop.xlane.xlu0 %834
    %v836 = vsel %vm719, %v832, 0.0
    %837 = vadd.xlane.f32.xlu0 %v836
    %v838 = vpop.xlane.xlu0 %837
    %v839 = vrot.slane %v835, 4
    %v840 = vmax.f32 %v835, %v839
    %v841 = vrot.slane %v840, 2
    %v842 = vmax.f32 %v840, %v841
    %v843 = vrot.slane %v842, 1
    %v844 = vmax.f32 %v842, %v843
    %v845 = vrot.slane %v838, 4
    %v846 = vmax.f32 %v838, %v845
    %v847 = vrot.slane %v846, 2
    %v848 = vmax.f32 %v846, %v847
    %v849 = vrot.slane %v848, 1
    %v850 = vmax.f32 %v848, %v849
    %v851 = vsub.f32 %v835, %v844
    %v852 = vsub.f32 %v838, %v850
    %v853 = vmul.f32 %v851, 1.442695
    %v854 = vpow.pop %v853
    %v855 = vmul.f32 %v852, 1.442695
    %v856 = vpow.pop %v855
    %v857 = vrot.slane %v854, 4
    %v858 = vadd.f32 %v854, %v857
    %v859 = vrot.slane %v858, 2
    %v860 = vadd.f32 %v858, %v859
    %v861 = vrot.slane %v860, 1
    %v862 = vadd.f32 %v860, %v861
    %v863 = vrot.slane %v856, 4
    %v864 = vadd.f32 %v856, %v863
    %v865 = vrot.slane %v864, 2
    %v866 = vadd.f32 %v864, %v865
    %v867 = vrot.slane %v866, 1
    %v868 = vadd.f32 %v866, %v867
    %v869 = vrcp.pop %v862
    %v870 = vmul.f32 %v862, %v869
    %v871 = vsub.f32 1.0, %v870
    %v872 = vmul.f32 %v869, %v871
    %v873 = vadd.f32 %v869, %v872
    %vm874 = vweird.f32 %v862
    %vm875 = vweird.f32 %v869
    %vm876 = vmor %vm874, %vm875
    %v877 = vsel %vm876, %v869, %v873
    %v878 = vand.u32 2147483647, %v862
    %vm879 = vcmp.eq.f32.partialorder %v878, 8.507059e+37
    %v880 = vand.u32 %v862, 2147483648
    %v881 = vor.u32 1.1754944e-38, %v880
    %v882 = vsel %vm879, %v881, %v877
    %v883 = vmul.f32 %v854, %v882
    %v884 = vrcp.pop %v868
    %v885 = vmul.f32 %v868, %v884
    %v886 = vsub.f32 1.0, %v885
    %v887 = vmul.f32 %v884, %v886
    %v888 = vadd.f32 %v884, %v887
    %vm889 = vweird.f32 %v868
    %vm890 = vweird.f32 %v884
    %vm891 = vmor %vm889, %vm890
    %v892 = vsel %vm891, %v884, %v888
    %v893 = vand.u32 2147483647, %v868
    %vm894 = vcmp.eq.f32.partialorder %v893, 8.507059e+37
    %v895 = vand.u32 %v868, 2147483648
    %v896 = vor.u32 1.1754944e-38, %v895
    %v897 = vsel %vm894, %v896, %v892
    %v898 = vmul.f32 %v856, %v897
    %v899 = vmul.f32 %v883, %v786
    %v900 = vmul.f32 %v898, %v787
    %v901 = vsel %vm40, %v899, 0.0
    %v902 = vrot.slane %v901, 4
    %v903 = vadd.f32 %v901, %v902
    %v904 = vrot.slane %v903, 2
    %v905 = vadd.f32 %v903, %v904
    %v906 = vrot.slane %v905, 1
    %v907 = vadd.f32 %v905, %v906
    %v908 = vsel %vm40, %v900, 0.0
    %v909 = vrot.slane %v908, 4
    %v910 = vadd.f32 %v908, %v909
    %v911 = vrot.slane %v910, 2
    %v912 = vadd.f32 %v910, %v911
    %v913 = vrot.slane %v912, 1
    %v914 = vadd.f32 %v912, %v913
    %vm917 = vcmask 1041409
    %v918 = vsel %vm917, %v914, %v907
    %vm920 = vcmask 254976
    %921 = vst.msk [vmem:[#allocation2] sm:$0x3] %vm920, %v918
    // Predicated region
    $region34: #{tpu_custom_call.1} parent=1 // pred_check
      _
    $region35: #{tpu_custom_call.1} parent=1 // pred_check_branch
      %923 = sbr.rel (0) target = $region37
    $region36: #{tpu_custom_call.1} parent=1 // pred_region
      %925 = vsyncadd [#allocation3], 0
      %s927 = sshll.u32 [#allocation2], 4
      %s928 = int_to_ptr.vmem [resolvable:$true] %s927
      %s929 = sshll.u32 %s8, 4
      %s930 = int_to_ptr.hbm [resolvable:$true] %s929
      %932 = dma.vmem_to_hbm [thread:$0]  %s928, 32, %s930, [#allocation3]
    $region37: #{tpu_custom_call.1} parent=1 // pred_fallthru
      _
    // Predicated region
    $region38: #{tpu_custom_call.1} parent=1 // pred_check
      _
    $region39: #{tpu_custom_call.1} parent=1 // pred_check_branch
      %934 = sbr.rel (0) target = $region41
    $region40: #{tpu_custom_call.1} parent=1 // pred_region
      %936 = dma.done [#allocation3], 32
    $region41: #{tpu_custom_call.1} parent=1 // pred_fallthru
      _
    %937 = vsyncpa [#allocation3], 1

</llo_original>
